<compile_context>
chip_gen: v6e
topology: v6e:2x2x1
jax: 0.10.0
libtpu: 0.0.40
codegen_flags: <defaults>
</compile_context>

<pallas_src>
import functools

import jax
import jax.numpy as jnp
from jax.experimental import pallas as pl
from jax.experimental.pallas import tpu as pltpu


def _round_up(a: int, b: int) -> int:
    return ((a + b - 1) // b) * b


@functools.lru_cache(maxsize=1)
def _vmem_capacity_bytes() -> int:
    """Physical per-core VMEM; conservative 64 MiB (v7x) fallback if the query fails."""
    try:
        cap = getattr(pltpu.get_tpu_info(), "vmem_capacity_bytes", None)
        if cap:
            return int(cap)
    except Exception:
        pass
    return 64 << 20


def _footprint_bytes(tm, tk, num_k, d_in_p, act_isz, out_isz, x_bufs):
    """Approximate VMEM footprint of one pipelined step."""
    w_bufs = 1 if num_k == 1 else 2
    weights = w_bufs * (2 * d_in_p * tk * act_isz + tk * 4)     # W1 + W2 slices (+ b1)
    acts = x_bufs * tm * d_in_p * act_isz + 2 * tm * d_in_p * out_isz
    acc = 0 if num_k == 1 else tm * d_in_p * 4                  # f32 accumulator
    work = tm * (tk + 3 * d_in_p) * 4                           # h / y / LN temps (f32)
    vecs = 4 * d_in_p * 4                                       # b2, gamma, beta, mask
    return weights + acts + acc + work + vecs


def _pick_tiles(M, d_in_p, d_hid_p, act_isz, out_isz, sublane, budget, x_bufs):
    """Largest (tile_m, tile_k) fitting the VMEM budget; splits d_hid only if needed."""
    max_tm = _round_up(max(M, 1), sublane)
    tk_opts = [tk for tk in range(d_hid_p, 0, -128)
               if d_hid_p % tk == 0 and tk % 128 == 0]
    tm_opts = []
    tm = 8192
    while tm >= sublane:
        tm_opts.append(tm)
        tm //= 2
    for tk in tk_opts:
        num_k = d_hid_p // tk
        for tm in tm_opts:
            tm_eff = min(tm, max_tm)
            if _footprint_bytes(tm_eff, tk, num_k, d_in_p,
                                act_isz, out_isz, x_bufs) <= budget:
                return tm_eff, tk
    return sublane, 128  # last resort; vmem_limit is raised toward capacity below


def _finalize(y_partial, x, b2_ref, g_ref, beta_ref, mask_ref, o_ref, *, d_in, eps):
    # TODO(synk): dropout omitted (inference / eval mode -> identity).
    y = y_partial + b2_ref[...] + x.astype(jnp.float32)        # residual add (f32)
    d_in_p = y.shape[-1]
    if d_in_p == d_in:
        mean = jnp.mean(y, axis=-1, keepdims=True)
        centered = y - mean
        var = jnp.mean(centered * centered, axis=-1, keepdims=True)
    else:
        # Padded columns of y are exactly zero (zero-padded x / W / b), so plain sums
        # equal real-width sums; only the centered square needs the precomputed mask.
        inv_n = 1.0 / d_in
        mean = jnp.sum(y, axis=-1, keepdims=True) * inv_n
        centered = (y - mean) * mask_ref[...]
        var = jnp.sum(centered * centered, axis=-1, keepdims=True) * inv_n
    y_hat = (y - mean) * jax.lax.rsqrt(var + eps)
    # Padded gamma/beta are zero -> padded output columns are zero (sliced away anyway).
    o_ref[...] = (y_hat * g_ref[...] + beta_ref[...]).astype(o_ref.dtype)


def _ffn_kernel(x_ref, w1_ref, b1_ref, w2_ref, b2_ref, g_ref, beta_ref, mask_ref,
                o_ref, *scratch, num_k: int, d_in: int, eps: float):
    x = x_ref[...]                                              # (tm, d_in_p)

    # w_1 chunk: MXU matmul with f32 accumulation; bias + ReLU on the VPU.
    h = jnp.dot(x, w1_ref[...], preferred_element_type=jnp.float32) + b1_ref[...]
    h = jnp.maximum(h, 0.0)                                     # (tm, tk) f32
    # w_2 chunk: partial contribution back to d_in.
    yk = jnp.dot(h.astype(w2_ref.dtype), w2_ref[...],
                 preferred_element_type=jnp.float32)            # (tm, d_in_p) f32

    if num_k == 1:
        _finalize(yk, x, b2_ref, g_ref, beta_ref, mask_ref, o_ref, d_in=d_in, eps=eps)
    else:
        acc_ref = scratch[0]
        k = pl.program_id(1)

        @pl.when(k == 0)
        def _():
            acc_ref[...] = jnp.zeros_like(acc_ref)

        acc_ref[...] += yk

        @pl.when(k == num_k - 1)
        def _():
            _finalize(acc_ref[...], x, b2_ref, g_ref, beta_ref, mask_ref, o_ref,
                      d_in=d_in, eps=eps)


@functools.partial(jax.jit, static_argnames=("tile_m", "tile_k", "mxu_dtype"))
def positionwise_ffn(x, w1, b1, w2, b2, gamma, beta, *,
                     tile_m=None, tile_k=None, mxu_dtype=None):
    """x: (B, L, d_in). w1: (d_in, d_hid), w2: (d_hid, d_in). Returns (B, L, d_in)."""
    B, L, d_in = x.shape
    d_hid = w1.shape[1]
    M = B * L

    out_dtype = x.dtype
    cdt = jnp.dtype(mxu_dtype) if mxu_dtype is not None else jnp.dtype(x.dtype)
    act_isz = cdt.itemsize
    out_isz = jnp.dtype(out_dtype).itemsize
    sublane = 8 * (4 // act_isz)             # 8 for f32, 16 for bf16, 32 for int8/fp8

    d_in_p = _round_up(d_in, 128)            # lane-dense channels
    d_hid_p = _round_up(d_hid, 128)

    cap = _vmem_capacity_bytes()
    budget = int(0.7 * cap)
    x_bufs_hint = 3 if d_hid_p <= 256 else 2

    auto_tm, auto_tk = _pick_tiles(M, d_in_p, d_hid_p, act_isz, out_isz,
                                   sublane, budget, x_bufs_hint)
    if tile_k is not None and tile_k % 128 == 0 and d_hid_p % tile_k == 0:
        tk = int(tile_k)
    else:
        tk = auto_tk
    num_k = d_hid_p // tk

    if tile_m is None:
        tile_m = auto_tm
        # Keep >= 2 (ideally 4) row steps: megacore sharding + DMA/compute overlap.
        if M >= 2 * sublane:
            want = 4 if M >= 4 * sublane else 2
            tile_m = min(tile_m, _round_up((M + want - 1) // want, sublane))
    tile_m = max(sublane, _round_up(min(int(tile_m), _round_up(M, sublane)), sublane))

    # Prefer a nearby tile that divides M so the fast path skips row padding.
    if M % tile_m != 0 and M % sublane == 0:
        for cand in range(tile_m, max(sublane, tile_m // 2) - 1, -sublane):
            if M % cand == 0:
                tile_m = cand
                break

    M_p = _round_up(M, tile_m)
    grid_rows = M_p // tile_m
    x_bufs = 3 if (d_hid_p <= 256 and grid_rows >= 3) else 2

    # --- Host-side casts / padding (only when actually needed). ---
    x2 = x.reshape(M, d_in).astype(cdt)
    if (M_p != M) or (d_in_p != d_in):
        x2 = jnp.pad(x2, ((0, M_p - M), (0, d_in_p - d_in)))

    def _pad2(a, rows, cols):
        a = a.astype(cdt)
        if a.shape != (rows, cols):
            a = jnp.pad(a, ((0, rows - a.shape[0]), (0, cols - a.shape[1])))
        return a

    def _pad_row(a, cols):
        a = a.astype(jnp.float32)
        if a.shape[0] != cols:
            a = jnp.pad(a, (0, cols - a.shape[0]))
        return a.reshape(1, cols)

    w1p = _pad2(w1, d_in_p, d_hid_p)
    w2p = _pad2(w2, d_hid_p, d_in_p)
    b1p = _pad_row(b1, d_hid_p)
    b2p = _pad_row(b2, d_in_p)
    gp = _pad_row(gamma, d_in_p)
    bp = _pad_row(beta, d_in_p)
    mask = (jnp.arange(d_in_p) < d_in).astype(jnp.float32).reshape(1, d_in_p)

    # --- VMEM limit: footprint + headroom, never above ~0.9x physical capacity. ---
    fp = _footprint_bytes(tile_m, tk, num_k, d_in_p, act_isz, out_isz, x_bufs)
    vmem_limit = int(min(max(int(1.5 * fp), 32 << 20), int(0.9 * cap)))
    vmem_limit = int(max(vmem_limit, min(fp + (2 << 20), cap)))

    def _const(shape):
        # Constant block across the grid: fetched once, single VMEM buffer.
        return pl.BlockSpec(shape, lambda i, k: (0, 0), pipeline_mode=pl.Buffered(1))

    if num_k == 1:
        w1_spec = _const((d_in_p, d_hid_p))
        b1_spec = _const((1, d_hid_p))
        w2_spec = _const((d_hid_p, d_in_p))
        scratch = []
    else:
        w1_spec = pl.BlockSpec((d_in_p, tk), lambda i, k: (0, k))
        b1_spec = pl.BlockSpec((1, tk), lambda i, k: (0, k))
        w2_spec = pl.BlockSpec((tk, d_in_p), lambda i, k: (k, 0))
        scratch = [pltpu.VMEM((tile_m, d_in_p), jnp.float32)]

    x_spec = pl.BlockSpec((tile_m, d_in_p), lambda i, k: (i, 0),
                          pipeline_mode=pl.Buffered(x_bufs))
    out_spec = pl.BlockSpec((tile_m, d_in_p), lambda i, k: (i, 0))

    out = pl.pallas_call(
        functools.partial(_ffn_kernel, num_k=num_k, d_in=d_in, eps=1e-5),
        out_shape=jax.ShapeDtypeStruct((M_p, d_in_p), out_dtype),
        grid_spec=pltpu.PrefetchScalarGridSpec(
            num_scalar_prefetch=0,
            grid=(grid_rows, num_k),
            in_specs=[
                x_spec,                       # x rows (pipelined, held across k)
                w1_spec,                      # W1 (or d_hid chunk)
                b1_spec,                      # b1
                w2_spec,                      # W2 (or d_hid chunk)
                _const((1, d_in_p)),          # b2
                _const((1, d_in_p)),          # gamma
                _const((1, d_in_p)),          # beta
                _const((1, d_in_p)),          # LayerNorm column mask
            ],
            out_specs=out_spec,
            scratch_shapes=scratch,
        ),
        compiler_params=pltpu.CompilerParams(
            dimension_semantics=("parallel", "arbitrary"),
            vmem_limit_bytes=vmem_limit,
        ),
    )(x2, w1p, b1p, w2p, b2p, gp, bp, mask)

    if (M_p != M) or (d_in_p != d_in):
        out = out[:M, :d_in]
    return out.reshape(B, L, d_in)


def _reference(x, w1, b1, w2, b2, gamma, beta):
    h = jnp.maximum(jnp.einsum("bld,dh->blh", x, w1) + b1, 0.0)
    y = jnp.einsum("blh,hd->bld", h, w2) + b2
    y = y + x
    mean = jnp.mean(y, axis=-1, keepdims=True)
    var = jnp.mean((y - mean) ** 2, axis=-1, keepdims=True)
    return (y - mean) * jax.lax.rsqrt(var + 1e-5) * gamma + beta


if __name__ == "__main__":
    key = jax.random.PRNGKey(0)

    def make_inputs(key, B, L, d_in, d_hid):
        kx, k1, kb1, k2, kb2 = jax.random.split(key, 5)
        x = jax.random.normal(kx, (B, L, d_in), dtype=jnp.float32)
        # Conv1d(d_in, d_hid, 1).weight is (d_hid, d_in, 1); stored as (d_in, d_hid).
        w1 = jax.random.normal(k1, (d_in, d_hid), dtype=jnp.float32) * 0.1
        b1 = jax.random.normal(kb1, (d_hid,), dtype=jnp.float32) * 0.1
        w2 = jax.random.normal(k2, (d_hid, d_in), dtype=jnp.float32) * 0.1
        b2 = jax.random.normal(kb2, (d_in,), dtype=jnp.float32) * 0.1
        gamma = jnp.ones((d_in,), dtype=jnp.float32)
        beta = jnp.zeros((d_in,), dtype=jnp.float32)
        return x, w1, b1, w2, b2, gamma, beta

    k0, k1, k2 = jax.random.split(key, 3)

    # 1) Small shapes, auto tiles (masked LN path, >=2 row steps).
    args = make_inputs(k0, B=2, L=8, d_in=32, d_hid=64)
    out = jax.block_until_ready(positionwise_ffn(*args))
    ref = _reference(*args)
    assert out.shape == (2, 8, 32)
    assert jnp.allclose(out, ref, atol=1e-4, rtol=1e-4), "mismatch (small, f32)"

    # 2) Ragged M with an explicit row tile -> padded row grid + masked LN path.
    args2 = make_inputs(k1, B=3, L=100, d_in=32, d_hid=64)
    out2 = jax.block_until_ready(positionwise_ffn(*args2, tile_m=128))
    ref2 = _reference(*args2)
    assert out2.shape == (3, 100, 32)
    assert jnp.allclose(out2, ref2, atol=1e-4, rtol=1e-4), "mismatch (ragged rows)"

    # 3) Forced d_hid split -> exercises the accumulator / pl.when finalize path.
    args3 = make_inputs(k2, B=2, L=16, d_in=32, d_hid=256)
    out3 = jax.block_until_ready(positionwise_ffn(*args3, tile_k=128))
    ref3 = _reference(*args3)
    assert out3.shape == (2, 16, 32)
    assert jnp.allclose(out3, ref3, atol=1e-4, rtol=1e-4), "mismatch (d_hid split)"

    # 4) bf16 MXU option (accuracy tradeoff -> loose tolerance).
    out4 = jax.block_until_ready(positionwise_ffn(*args, mxu_dtype=jnp.bfloat16))
    assert out4.shape == (2, 8, 32)
    assert jnp.allclose(out4, ref, atol=5e-2, rtol=5e-2), "mismatch (bf16 MXU)"

    print("KERNEL_OK")
</pallas_src>

<mosaic_0001>
module attributes {stable_mosaic.version = 11 : i64} {
  func.func @_ffn_kernel(%arg0: i32, %arg1: i32, %arg2: memref<8x128xf32, #tpu.memory_space<vmem>>, %arg3: memref<128x128xf32, #tpu.memory_space<vmem>>, %arg4: memref<1x128xf32, #tpu.memory_space<vmem>>, %arg5: memref<128x128xf32, #tpu.memory_space<vmem>>, %arg6: memref<1x128xf32, #tpu.memory_space<vmem>>, %arg7: memref<1x128xf32, #tpu.memory_space<vmem>>, %arg8: memref<1x128xf32, #tpu.memory_space<vmem>>, %arg9: memref<1x128xf32, #tpu.memory_space<vmem>>, %arg10: memref<8x128xf32, #tpu.memory_space<vmem>>) attributes {dimension_semantics = [#tpu.dimension_semantics<parallel>, #tpu.dimension_semantics<arbitrary>], iteration_bounds = array<i64: 2, 1>, scalar_prefetch = 0 : i64, scratch_operands = 0 : i64, tpu.core_type = #tpu.core_type<tc>, window_params = [{pipeline_mode = #tpu.pipeline_mode<double_buffered>, transform_indices = @transform_0, window_bounds = array<i64: 8, 128>}, {pipeline_mode = #tpu.pipeline_mode<synchronous>, transform_indices = @transform_1, window_bounds = array<i64: 128, 128>}, {pipeline_mode = #tpu.pipeline_mode<synchronous>, transform_indices = @transform_2, window_bounds = array<i64: 1, 128>}, {pipeline_mode = #tpu.pipeline_mode<synchronous>, transform_indices = @transform_3, window_bounds = array<i64: 128, 128>}, {pipeline_mode = #tpu.pipeline_mode<synchronous>, transform_indices = @transform_4, window_bounds = array<i64: 1, 128>}, {pipeline_mode = #tpu.pipeline_mode<synchronous>, transform_indices = @transform_5, window_bounds = array<i64: 1, 128>}, {pipeline_mode = #tpu.pipeline_mode<synchronous>, transform_indices = @transform_6, window_bounds = array<i64: 1, 128>}, {pipeline_mode = #tpu.pipeline_mode<synchronous>, transform_indices = @transform_7, window_bounds = array<i64: 1, 128>}, {transform_indices = @transform_8, window_bounds = array<i64: 8, 128>}]} {
    %c0 = arith.constant 0 : index
    %c0_0 = arith.constant 0 : index
    %0 = vector.load %arg2[%c0, %c0_0] : memref<8x128xf32, #tpu.memory_space<vmem>>, vector<8x128xf32>
    %c0_1 = arith.constant 0 : index
    %c0_2 = arith.constant 0 : index
    %1 = vector.load %arg3[%c0_1, %c0_2] : memref<128x128xf32, #tpu.memory_space<vmem>>, vector<128x128xf32>
    %cst = arith.constant dense<0.000000e+00> : vector<8x128xf32>
    %2 = tpu.matmul %0, %1, %cst {dimension_numbers = #tpu.dot_dimension_numbers<[1], [0], [0], [1], [0, 0, 1, 1], [], []>} : vector<8x128xf32>, vector<128x128xf32>, vector<8x128xf32> -> vector<8x128xf32>
    %c0_3 = arith.constant 0 : index
    %c0_4 = arith.constant 0 : index
    %3 = vector.load %arg4[%c0_3, %c0_4] : memref<1x128xf32, #tpu.memory_space<vmem>>, vector<1x128xf32>
    %4 = vector.broadcast %3 : vector<1x128xf32> to vector<8x128xf32>
    %5 = arith.addf %2, %4 : vector<8x128xf32>
    %cst_5 = arith.constant 0.000000e+00 : f32
    %6 = vector.broadcast %cst_5 : f32 to vector<8x128xf32>
    %7 = arith.maximumf %5, %6 : vector<8x128xf32>
    %c0_6 = arith.constant 0 : index
    %c0_7 = arith.constant 0 : index
    %8 = vector.load %arg5[%c0_6, %c0_7] : memref<128x128xf32, #tpu.memory_space<vmem>>, vector<128x128xf32>
    %cst_8 = arith.constant dense<0.000000e+00> : vector<8x128xf32>
    %9 = tpu.matmul %7, %8, %cst_8 {dimension_numbers = #tpu.dot_dimension_numbers<[1], [0], [0], [1], [0, 0, 1, 1], [], []>} : vector<8x128xf32>, vector<128x128xf32>, vector<8x128xf32> -> vector<8x128xf32>
    %c0_9 = arith.constant 0 : index
    %c0_10 = arith.constant 0 : index
    %10 = vector.load %arg6[%c0_9, %c0_10] : memref<1x128xf32, #tpu.memory_space<vmem>>, vector<1x128xf32>
    %11 = vector.broadcast %10 : vector<1x128xf32> to vector<8x128xf32>
    %12 = arith.addf %9, %11 : vector<8x128xf32>
    %13 = arith.addf %12, %0 : vector<8x128xf32>
    %cst_11 = arith.constant dense<0.000000e+00> : vector<8xf32>
    %14 = vector.multi_reduction <add>, %13, %cst_11 [1] : vector<8x128xf32> to vector<8xf32>
    %15 = vector.shape_cast %14 : vector<8xf32> to vector<8x1xf32>
    %cst_12 = arith.constant 3.125000e-02 : f32
    %16 = vector.broadcast %cst_12 : f32 to vector<8x1xf32>
    %17 = arith.mulf %15, %16 : vector<8x1xf32>
    %18 = vector.broadcast %17 : vector<8x1xf32> to vector<8x128xf32>
    %19 = arith.subf %13, %18 : vector<8x128xf32>
    %c0_13 = arith.constant 0 : index
    %c0_14 = arith.constant 0 : index
    %20 = vector.load %arg9[%c0_13, %c0_14] : memref<1x128xf32, #tpu.memory_space<vmem>>, vector<1x128xf32>
    %21 = vector.broadcast %20 : vector<1x128xf32> to vector<8x128xf32>
    %22 = arith.mulf %19, %21 : vector<8x128xf32>
    %23 = arith.mulf %22, %22 : vector<8x128xf32>
    %cst_15 = arith.constant dense<0.000000e+00> : vector<8xf32>
    %24 = vector.multi_reduction <add>, %23, %cst_15 [1] : vector<8x128xf32> to vector<8xf32>
    %25 = vector.shape_cast %24 : vector<8xf32> to vector<8x1xf32>
    %cst_16 = arith.constant 3.125000e-02 : f32
    %26 = vector.broadcast %cst_16 : f32 to vector<8x1xf32>
    %27 = arith.mulf %25, %26 : vector<8x1xf32>
    %28 = vector.broadcast %17 : vector<8x1xf32> to vector<8x128xf32>
    %29 = arith.subf %13, %28 : vector<8x128xf32>
    %cst_17 = arith.constant 9.99999974E-6 : f32
    %30 = vector.broadcast %cst_17 : f32 to vector<8x1xf32>
    %31 = arith.addf %27, %30 : vector<8x1xf32>
    %32 = math.rsqrt %31 : vector<8x1xf32>
    %33 = vector.broadcast %32 : vector<8x1xf32> to vector<8x128xf32>
    %34 = arith.mulf %29, %33 : vector<8x128xf32>
    %c0_18 = arith.constant 0 : index
    %c0_19 = arith.constant 0 : index
    %35 = vector.load %arg7[%c0_18, %c0_19] : memref<1x128xf32, #tpu.memory_space<vmem>>, vector<1x128xf32>
    %36 = vector.broadcast %35 : vector<1x128xf32> to vector<8x128xf32>
    %37 = arith.mulf %34, %36 : vector<8x128xf32>
    %c0_20 = arith.constant 0 : index
    %c0_21 = arith.constant 0 : index
    %38 = vector.load %arg8[%c0_20, %c0_21] : memref<1x128xf32, #tpu.memory_space<vmem>>, vector<1x128xf32>
    %39 = vector.broadcast %38 : vector<1x128xf32> to vector<8x128xf32>
    %40 = arith.addf %37, %39 : vector<8x128xf32>
    %c0_22 = arith.constant 0 : index
    %c0_23 = arith.constant 0 : index
    %41 = vector.load %arg10[%c0_22, %c0_23] : memref<8x128xf32, #tpu.memory_space<vmem>>, vector<8x128xf32>
    tpu.vector_store %arg10[%c0_22, %c0_23], %40 {strides = array<i32>} : memref<8x128xf32, #tpu.memory_space<vmem>>, vector<8x128xf32>,
    return
  }
  func.func @transform_0(%arg0: i32, %arg1: i32) -> (i32, i32) {
    %c0_i32 = arith.constant 0 : i32
    %c0_i32_0 = arith.constant 0 : i32
    return %arg0, %c0_i32 : i32, i32
  }
  func.func @transform_1(%arg0: i32, %arg1: i32) -> (i32, i32) {
    %c0_i32 = arith.constant 0 : i32
    %c0_i32_0 = arith.constant 0 : i32
    %c0_i32_1 = arith.constant 0 : i32
    return %c0_i32, %c0_i32_0 : i32, i32
  }
  func.func @transform_2(%arg0: i32, %arg1: i32) -> (i32, i32) {
    %c0_i32 = arith.constant 0 : i32
    %c0_i32_0 = arith.constant 0 : i32
    %c0_i32_1 = arith.constant 0 : i32
    return %c0_i32, %c0_i32_0 : i32, i32
  }
  func.func @transform_3(%arg0: i32, %arg1: i32) -> (i32, i32) {
    %c0_i32 = arith.constant 0 : i32
    %c0_i32_0 = arith.constant 0 : i32
    %c0_i32_1 = arith.constant 0 : i32
    return %c0_i32, %c0_i32_0 : i32, i32
  }
  func.func @transform_4(%arg0: i32, %arg1: i32) -> (i32, i32) {
    %c0_i32 = arith.constant 0 : i32
    %c0_i32_0 = arith.constant 0 : i32
    %c0_i32_1 = arith.constant 0 : i32
    return %c0_i32, %c0_i32_0 : i32, i32
  }
  func.func @transform_5(%arg0: i32, %arg1: i32) -> (i32, i32) {
    %c0_i32 = arith.constant 0 : i32
    %c0_i32_0 = arith.constant 0 : i32
    %c0_i32_1 = arith.constant 0 : i32
    return %c0_i32, %c0_i32_0 : i32, i32
  }
  func.func @transform_6(%arg0: i32, %arg1: i32) -> (i32, i32) {
    %c0_i32 = arith.constant 0 : i32
    %c0_i32_0 = arith.constant 0 : i32
    %c0_i32_1 = arith.constant 0 : i32
    return %c0_i32, %c0_i32_0 : i32, i32
  }
  func.func @transform_7(%arg0: i32, %arg1: i32) -> (i32, i32) {
    %c0_i32 = arith.constant 0 : i32
    %c0_i32_0 = arith.constant 0 : i32
    %c0_i32_1 = arith.constant 0 : i32
    return %c0_i32, %c0_i32_0 : i32, i32
  }
  func.func @transform_8(%arg0: i32, %arg1: i32) -> (i32, i32) {
    %c0_i32 = arith.constant 0 : i32
    %c0_i32_0 = arith.constant 0 : i32
    return %arg0, %c0_i32 : i32, i32
  }
}

</mosaic_0001>

<llo_original>
// kernel: positionwise_ffn.1
$region0: #{positionwise_ffn.1}
  #allocation0 [shape = 'u32[]', space=smem, size = 0x4, offset = 0x4, fixed_abs, tag = 'smem constant byte address 0x4 - core index']
  #allocation1 [shape = 'u32[144,128]{1,0:T(1,128)}', space=vmem, size = 0x12000, scoped, tag = 'internal scratch']
  %s0 = inlined_call_operand.vmem [shape: f32[16,128], index: 0, kind: input, shape index: {}]
  %s1 = inlined_call_operand.vmem [shape: f32[128,128], index: 1, kind: input, shape index: {}]
  %s2 = inlined_call_operand.vmem [shape: f32[1,128], index: 2, kind: input, shape index: {}]
  %s3 = inlined_call_operand.vmem [shape: f32[128,128], index: 3, kind: input, shape index: {}]
  %s4 = inlined_call_operand.vmem [shape: f32[1,128], index: 4, kind: input, shape index: {}]
  %s5 = inlined_call_operand.vmem [shape: f32[1,128], index: 5, kind: input, shape index: {}]
  %s6 = inlined_call_operand.vmem [shape: f32[1,128], index: 6, kind: input, shape index: {}]
  %s7 = inlined_call_operand.vmem [shape: f32[1,128], index: 7, kind: input, shape index: {}]
  %s8 = inlined_call_operand.vmem [shape: f32[16,128], index: 8, kind: output, shape index: {}]
  %s9 = sld [smem:[#allocation0]]
  $region65: #{positionwise_ffn.1} parent=0
    _
  %s11 = ssub.s32 1, %s9
  %s12 = scalar_select 0, %s11, %s9
  loop: start=0, step=1, limit=4
  $region2: #{positionwise_ffn.1} parent=0 // loop_pre_header
    _
  $region3: #{positionwise_ffn.1} parent=0 // loop_header
    %s14 = sphi 0, %s18
    %p15 = scmp.ge.s32.totalorder %s14, 4
    %s21 = sphi 0, %s33
    %s22 = sphi 0, %s29
    %s23 = sphi 0, %s21
    %s24 = sphi 0, %s22
    %s25 = sphi 0, %s23
    %s26 = sphi 0, %s24
    %s36 = sphi 0, %s38
    %s39 = sphi 0, %s36
    %s40 = sphi 0, %s39
    %s56 = sphi 0, %s40
    %s60 = sphi 0, %s60
    %s62 = sphi 0, %s60
    %s63 = sphi 0, %s62
    %s77 = sphi 0, %s63
    %s81 = sphi 0, %s81
    %s83 = sphi 0, %s81
    %s84 = sphi 0, %s83
    %s98 = sphi 0, %s84
    %s102 = sphi 0, %s102
    %s104 = sphi 0, %s102
    %s105 = sphi 0, %s104
    %s119 = sphi 0, %s105
    %s123 = sphi 0, %s123
    %s125 = sphi 0, %s123
    %s126 = sphi 0, %s125
    %s140 = sphi 0, %s126
    %s144 = sphi 0, %s144
    %s146 = sphi 0, %s144
    %s147 = sphi 0, %s146
    %s161 = sphi 0, %s147
    %s165 = sphi 0, %s165
    %s167 = sphi 0, %s165
    %s168 = sphi 0, %s167
    %s182 = sphi 0, %s168
    %s186 = sphi 0, %s186
    %s188 = sphi 0, %s186
    %s189 = sphi 0, %s188
    %s203 = sphi 0, %s189
    %s209 = sphi 0, %s211
    %s212 = sphi 0, %s209
    %s213 = sphi 0, %s212
    %s229 = sphi 0, %s213
  $region4: #{positionwise_ffn.1} parent=0 // loop_header_branch
    %17 = sbr.rel (%p15) target = $region8
  $region5: #{positionwise_ffn.1} parent=0 // loop_body
    %s19 = ssub.s32 %s14, 1
    %s20 = ssub.s32 %s14, 2
    %s27 = sadd.s32 1, %s22
    %p28 = scmp.ge.s32.totalorder %s27, 1
    %s29 = scalar_select %p28, 0, %s27
    %s30 = sadd.s32 1, %s21
    %s31 = scalar_select %p28, %s30, %s21
    %p32 = scmp.ge.s32.totalorder %s31, 2
    %s33 = scalar_select %p32, 0, %s31
    %s34 = ssub.s32 %s21, %s33
    %p35 = scmp.eq.s32.totalorder %s34, 0
    %s37 = sadd.s32 %s36, 1
    %s38 = scalar_select %p35, %s36, %s37
    %p41 = pneg %p35
    %p42 = scmp.eq.s32.totalorder %s14, 1
    %p43 = por %p41, %p42
    %p44 = scmp.ne.s32.totalorder %s36, %s39
    %p45 = scmp.eq.s32.totalorder %s14, 0
    %p46 = por %p44, %p45
    %p47 = scmp.ne.s32.totalorder %s36, %s39
    %p48 = scmp.eq.s32.totalorder %s19, 1
    %p49 = por %p47, %p48
    %p50 = scmp.ne.s32.totalorder %s39, %s40
    %p51 = scmp.eq.s32.totalorder %s19, 0
    %p52 = por %p50, %p51
    %p53 = scmp.ne.s32.totalorder %s39, %s40
    %p54 = scmp.eq.s32.totalorder %s20, 1
    %p55 = por %p53, %p54
    %p57 = scmp.ne.s32.totalorder %s40, %s56
    %p58 = scmp.eq.s32.totalorder %s20, 0
    %p59 = por %p57, %p58
    %s61 = sadd.s32 %s60, 1
    %p64 = scmp.eq.s32.totalorder %s14, 1
    %p65 = scmp.ne.s32.totalorder %s60, %s62
    %p66 = scmp.eq.s32.totalorder %s14, 0
    %p67 = por %p65, %p66
    %p68 = scmp.ne.s32.totalorder %s60, %s62
    %p69 = scmp.eq.s32.totalorder %s19, 1
    %p70 = por %p68, %p69
    %p71 = scmp.ne.s32.totalorder %s62, %s63
    %p72 = scmp.eq.s32.totalorder %s19, 0
    %p73 = por %p71, %p72
    %p74 = scmp.ne.s32.totalorder %s62, %s63
    %p75 = scmp.eq.s32.totalorder %s20, 1
    %p76 = por %p74, %p75
    %p78 = scmp.ne.s32.totalorder %s63, %s77
    %p79 = scmp.eq.s32.totalorder %s20, 0
    %p80 = por %p78, %p79
    %s82 = sadd.s32 %s81, 1
    %p85 = scmp.eq.s32.totalorder %s14, 1
    %p86 = scmp.ne.s32.totalorder %s81, %s83
    %p87 = scmp.eq.s32.totalorder %s14, 0
    %p88 = por %p86, %p87
    %p89 = scmp.ne.s32.totalorder %s81, %s83
    %p90 = scmp.eq.s32.totalorder %s19, 1
    %p91 = por %p89, %p90
    %p92 = scmp.ne.s32.totalorder %s83, %s84
    %p93 = scmp.eq.s32.totalorder %s19, 0
    %p94 = por %p92, %p93
    %p95 = scmp.ne.s32.totalorder %s83, %s84
    %p96 = scmp.eq.s32.totalorder %s20, 1
    %p97 = por %p95, %p96
    %p99 = scmp.ne.s32.totalorder %s84, %s98
    %p100 = scmp.eq.s32.totalorder %s20, 0
    %p101 = por %p99, %p100
    %s103 = sadd.s32 %s102, 1
    %p106 = scmp.eq.s32.totalorder %s14, 1
    %p107 = scmp.ne.s32.totalorder %s102, %s104
    %p108 = scmp.eq.s32.totalorder %s14, 0
    %p109 = por %p107, %p108
    %p110 = scmp.ne.s32.totalorder %s102, %s104
    %p111 = scmp.eq.s32.totalorder %s19, 1
    %p112 = por %p110, %p111
    %p113 = scmp.ne.s32.totalorder %s104, %s105
    %p114 = scmp.eq.s32.totalorder %s19, 0
    %p115 = por %p113, %p114
    %p116 = scmp.ne.s32.totalorder %s104, %s105
    %p117 = scmp.eq.s32.totalorder %s20, 1
    %p118 = por %p116, %p117
    %p120 = scmp.ne.s32.totalorder %s105, %s119
    %p121 = scmp.eq.s32.totalorder %s20, 0
    %p122 = por %p120, %p121
    %s124 = sadd.s32 %s123, 1
    %p127 = scmp.eq.s32.totalorder %s14, 1
    %p128 = scmp.ne.s32.totalorder %s123, %s125
    %p129 = scmp.eq.s32.totalorder %s14, 0
    %p130 = por %p128, %p129
    %p131 = scmp.ne.s32.totalorder %s123, %s125
    %p132 = scmp.eq.s32.totalorder %s19, 1
    %p133 = por %p131, %p132
    %p134 = scmp.ne.s32.totalorder %s125, %s126
    %p135 = scmp.eq.s32.totalorder %s19, 0
    %p136 = por %p134, %p135
    %p137 = scmp.ne.s32.totalorder %s125, %s126
    %p138 = scmp.eq.s32.totalorder %s20, 1
    %p139 = por %p137, %p138
    %p141 = scmp.ne.s32.totalorder %s126, %s140
    %p142 = scmp.eq.s32.totalorder %s20, 0
    %p143 = por %p141, %p142
    %s145 = sadd.s32 %s144, 1
    %p148 = scmp.eq.s32.totalorder %s14, 1
    %p149 = scmp.ne.s32.totalorder %s144, %s146
    %p150 = scmp.eq.s32.totalorder %s14, 0
    %p151 = por %p149, %p150
    %p152 = scmp.ne.s32.totalorder %s144, %s146
    %p153 = scmp.eq.s32.totalorder %s19, 1
    %p154 = por %p152, %p153
    %p155 = scmp.ne.s32.totalorder %s146, %s147
    %p156 = scmp.eq.s32.totalorder %s19, 0
    %p157 = por %p155, %p156
    %p158 = scmp.ne.s32.totalorder %s146, %s147
    %p159 = scmp.eq.s32.totalorder %s20, 1
    %p160 = por %p158, %p159
    %p162 = scmp.ne.s32.totalorder %s147, %s161
    %p163 = scmp.eq.s32.totalorder %s20, 0
    %p164 = por %p162, %p163
    %s166 = sadd.s32 %s165, 1
    %p169 = scmp.eq.s32.totalorder %s14, 1
    %p170 = scmp.ne.s32.totalorder %s165, %s167
    %p171 = scmp.eq.s32.totalorder %s14, 0
    %p172 = por %p170, %p171
    %p173 = scmp.ne.s32.totalorder %s165, %s167
    %p174 = scmp.eq.s32.totalorder %s19, 1
    %p175 = por %p173, %p174
    %p176 = scmp.ne.s32.totalorder %s167, %s168
    %p177 = scmp.eq.s32.totalorder %s19, 0
    %p178 = por %p176, %p177
    %p179 = scmp.ne.s32.totalorder %s167, %s168
    %p180 = scmp.eq.s32.totalorder %s20, 1
    %p181 = por %p179, %p180
    %p183 = scmp.ne.s32.totalorder %s168, %s182
    %p184 = scmp.eq.s32.totalorder %s20, 0
    %p185 = por %p183, %p184
    %s187 = sadd.s32 %s186, 1
    %p190 = scmp.eq.s32.totalorder %s14, 1
    %p191 = scmp.ne.s32.totalorder %s186, %s188
    %p192 = scmp.eq.s32.totalorder %s14, 0
    %p193 = por %p191, %p192
    %p194 = scmp.ne.s32.totalorder %s186, %s188
    %p195 = scmp.eq.s32.totalorder %s19, 1
    %p196 = por %p194, %p195
    %p197 = scmp.ne.s32.totalorder %s188, %s189
    %p198 = scmp.eq.s32.totalorder %s19, 0
    %p199 = por %p197, %p198
    %p200 = scmp.ne.s32.totalorder %s188, %s189
    %p201 = scmp.eq.s32.totalorder %s20, 1
    %p202 = por %p200, %p201
    %p204 = scmp.ne.s32.totalorder %s189, %s203
    %p205 = scmp.eq.s32.totalorder %s20, 0
    %p206 = por %p204, %p205
    %s207 = ssub.s32 %s21, %s33
    %p208 = scmp.eq.s32.totalorder %s207, 0
    %s210 = sadd.s32 %s209, 1
    %s211 = scalar_select %p208, %s209, %s210
    %p214 = pneg %p208
    %p215 = scmp.eq.s32.totalorder %s14, 1
    %p216 = por %p214, %p215
    %p217 = scmp.ne.s32.totalorder %s209, %s212
    %p218 = scmp.eq.s32.totalorder %s14, 0
    %p219 = por %p217, %p218
    %p220 = scmp.ne.s32.totalorder %s209, %s212
    %p221 = scmp.eq.s32.totalorder %s19, 1
    %p222 = por %p220, %p221
    %p223 = scmp.ne.s32.totalorder %s212, %s213
    %p224 = scmp.eq.s32.totalorder %s19, 0
    %p225 = por %p223, %p224
    %p226 = scmp.ne.s32.totalorder %s212, %s213
    %p227 = scmp.eq.s32.totalorder %s20, 1
    %p228 = por %p226, %p227
    %p230 = scmp.ne.s32.totalorder %s213, %s229
    %p231 = scmp.eq.s32.totalorder %s20, 0
    %p232 = por %p230, %p231
    %p233 = scmp.le.s32.totalorder 1, %s14
    %p234 = scmp.lt.s32.totalorder %s14, 3
    %p235 = pnand %p233, %p234
    %p236 = pneg %p235
    // Predicated region
    $region9: #{positionwise_ffn.1} parent=5 // pred_check
      _
    $region10: #{positionwise_ffn.1} parent=5 // pred_check_branch
      %238 = sbr.rel (%p235) target = $region12
    $region11: #{positionwise_ffn.1} parent=5 // pred_region
      %s239 = ssub.s32 %s14, 1
      // Predicated region
      $region13: #{positionwise_ffn.1} parent=11 // pred_check
        %p240 = pneg %p73
      $region14: #{positionwise_ffn.1} parent=11 // pred_check_branch
        %242 = sbr.rel (%p240) target = $region16
      $region15: #{positionwise_ffn.1} parent=11 // pred_region
        _
      $region16: #{positionwise_ffn.1} parent=11 // pred_fallthru
        _
      // Predicated region
      $region17: #{positionwise_ffn.1} parent=11 // pred_check
        %p243 = pneg %p94
      $region18: #{positionwise_ffn.1} parent=11 // pred_check_branch
        %245 = sbr.rel (%p243) target = $region20
      $region19: #{positionwise_ffn.1} parent=11 // pred_region
        _
      $region20: #{positionwise_ffn.1} parent=11 // pred_fallthru
        _
      // Predicated region
      $region21: #{positionwise_ffn.1} parent=11 // pred_check
        %p246 = pneg %p115
      $region22: #{positionwise_ffn.1} parent=11 // pred_check_branch
        %248 = sbr.rel (%p246) target = $region24
      $region23: #{positionwise_ffn.1} parent=11 // pred_region
        _
      $region24: #{positionwise_ffn.1} parent=11 // pred_fallthru
        _
      // Predicated region
      $region25: #{positionwise_ffn.1} parent=11 // pred_check
        %p249 = pneg %p136
      $region26: #{positionwise_ffn.1} parent=11 // pred_check_branch
        %251 = sbr.rel (%p249) target = $region28
      $region27: #{positionwise_ffn.1} parent=11 // pred_region
        _
      $region28: #{positionwise_ffn.1} parent=11 // pred_fallthru
        _
      // Predicated region
      $region29: #{positionwise_ffn.1} parent=11 // pred_check
        %p252 = pneg %p157
      $region30: #{positionwise_ffn.1} parent=11 // pred_check_branch
        %254 = sbr.rel (%p252) target = $region32
      $region31: #{positionwise_ffn.1} parent=11 // pred_region
        _
      $region32: #{positionwise_ffn.1} parent=11 // pred_fallthru
        _
      // Predicated region
      $region33: #{positionwise_ffn.1} parent=11 // pred_check
        %p255 = pneg %p178
      $region34: #{positionwise_ffn.1} parent=11 // pred_check_branch
        %257 = sbr.rel (%p255) target = $region36
      $region35: #{positionwise_ffn.1} parent=11 // pred_region
        _
      $region36: #{positionwise_ffn.1} parent=11 // pred_fallthru
        _
      // Predicated region
      $region37: #{positionwise_ffn.1} parent=11 // pred_check
        %p258 = pneg %p199
      $region38: #{positionwise_ffn.1} parent=11 // pred_check_branch
        %260 = sbr.rel (%p258) target = $region40
      $region39: #{positionwise_ffn.1} parent=11 // pred_region
        _
      $region40: #{positionwise_ffn.1} parent=11 // pred_fallthru
        _
    $region12: #{positionwise_ffn.1} parent=5 // pred_fallthru
      _
    %p261 = scmp.lt.s32.totalorder %s14, 2
    // Predicated region
    $region41: #{positionwise_ffn.1} parent=5 // pred_check
      %p262 = pneg %p261
    $region42: #{positionwise_ffn.1} parent=5 // pred_check_branch
      %264 = sbr.rel (%p262) target = $region44
    $region43: #{positionwise_ffn.1} parent=5 // pred_region
      // Predicated region
      $region45: #{positionwise_ffn.1} parent=43 // pred_check
        %p265 = pneg %p46
      $region46: #{positionwise_ffn.1} parent=43 // pred_check_branch
        %267 = sbr.rel (%p265) target = $region48
      $region47: #{positionwise_ffn.1} parent=43 // pred_region
        %p268 = scmp.lt.s32.totalorder %s21, 1
        %s269 = scalar_select %p268, %s21, 1
        %s270 = smul.addr %s269, 8
        %s271 = scalar_lea.vmem %s0, %s270
      $region48: #{positionwise_ffn.1} parent=43 // pred_fallthru
        _
    $region44: #{positionwise_ffn.1} parent=5 // pred_fallthru
      _
    %p272 = scmp.le.s32.totalorder 1, %s14
    %p273 = scmp.lt.s32.totalorder %s14, 3
    %p274 = pnand %p272, %p273
    %p275 = pneg %p274
    // Predicated region
    $region49: #{positionwise_ffn.1} parent=5 // pred_check
      _
    $region50: #{positionwise_ffn.1} parent=5 // pred_check_branch
      %277 = sbr.rel (%p274) target = $region52
    $region51: #{positionwise_ffn.1} parent=5 // pred_region
      %s278 = ssub.s32 %s14, 1
      %p279 = scmp.lt.s32.totalorder %s23, 1
      %s280 = scalar_select %p279, %s23, 1
      %s281 = smul.addr %s280, 8
      %s282 = scalar_lea.vmem %s0, %s281
      %p283 = pneg %p52
      %p284 = pneg %p49
      %p285 = pneg %p73
      %p286 = pneg %p70
      %p287 = pneg %p94
      %p288 = pneg %p91
      %p289 = pneg %p115
      %p290 = pneg %p112
      %p291 = pneg %p136
      %p292 = pneg %p133
      %p293 = pneg %p157
      %p294 = pneg %p154
      %p295 = pneg %p178
      %p296 = pneg %p175
      %p297 = pneg %p199
      %p298 = pneg %p196
      %p299 = pneg %p225
      %p300 = pneg %p222
      %p301 = scmp.lt.s32.totalorder %s23, 1
      %s302 = scalar_select %p301, %s23, 1
      %s303 = smul.addr %s302, 8
      %s304 = scalar_lea.vmem %s8, %s303
      %p305 = scmp.lt.s32.totalorder %s23, 1
      %s306 = scalar_select %p305, %s23, 1
      %s307 = smul.addr %s306, 8
      %s308 = scalar_lea.vmem %s0, %s307
      %p309 = scmp.lt.s32.totalorder %s23, 1
      %s310 = scalar_select %p309, %s23, 1
      %s311 = smul.addr %s310, 8
      %s312 = scalar_lea.vmem %s8, %s311
      %v313 = vld [vmem:[%s308] sm:$0xff]
      %v314 = vld [vmem:[%s1] sm:$0xff]
      %v315 = vld [vmem:[%s1 + $0x8] sm:$0xff]
      %v316 = vld [vmem:[%s1 + $0x10] sm:$0xff]
      %v317 = vld [vmem:[%s1 + $0x18] sm:$0xff]
      %v318 = vld [vmem:[%s1 + $0x20] sm:$0xff]
      %v319 = vld [vmem:[%s1 + $0x28] sm:$0xff]
      %v320 = vld [vmem:[%s1 + $0x30] sm:$0xff]
      %v321 = vld [vmem:[%s1 + $0x38] sm:$0xff]
      %v322 = vld [vmem:[%s1 + $0x40] sm:$0xff]
      %v323 = vld [vmem:[%s1 + $0x48] sm:$0xff]
      %v324 = vld [vmem:[%s1 + $0x50] sm:$0xff]
      %v325 = vld [vmem:[%s1 + $0x58] sm:$0xff]
      %v326 = vld [vmem:[%s1 + $0x60] sm:$0xff]
      %v327 = vld [vmem:[%s1 + $0x68] sm:$0xff]
      %v328 = vld [vmem:[%s1 + $0x70] sm:$0xff]
      %v329 = vld [vmem:[%s1 + $0x78] sm:$0xff]
      %v330 = vld [vmem:[%s2] sm:$0x1]
      %v332 = vlaneseq
      %v333 = vshrl.u32 %v332, 7
      %v334 = vsub.s32 0, %v333
      %v335 = vrot.slane %v330, %v334
      %337 = vmatprep.subr.mxu0 0.0
      %338 = vmatpush1.msra.mxu0 %v329
      %339 = vmatprep.subr.mxu0 0.0
      %340 = vmatpush1.msra.mxu0 %v328
      %341 = vmatprep.subr.mxu0 0.0
      %342 = vmatpush1.msra.mxu0 %v327
      %343 = vmatprep.subr.mxu0 0.0
      %344 = vmatpush1.msra.mxu0 %v326
      %345 = vmatprep.subr.mxu0 0.0
      %346 = vmatpush1.msra.mxu0 %v325
      %347 = vmatprep.subr.mxu0 0.0
      %348 = vmatpush1.msra.mxu0 %v324
      %349 = vmatprep.subr.mxu0 0.0
      %350 = vmatpush1.msra.mxu0 %v323
      %351 = vmatprep.subr.mxu0 0.0
      %352 = vmatpush1.msra.mxu0 %v322
      %353 = vmatprep.subr.mxu0 0.0
      %354 = vmatpush1.msra.mxu0 %v321
      %355 = vmatprep.subr.mxu0 0.0
      %356 = vmatpush1.msra.mxu0 %v320
      %357 = vmatprep.subr.mxu0 0.0
      %358 = vmatpush1.msra.mxu0 %v319
      %359 = vmatprep.subr.mxu0 0.0
      %360 = vmatpush1.msra.mxu0 %v318
      %361 = vmatprep.subr.mxu0 0.0
      %362 = vmatpush1.msra.mxu0 %v317
      %363 = vmatprep.subr.mxu0 0.0
      %364 = vmatpush1.msra.mxu0 %v316
      %365 = vmatprep.subr.mxu0 0.0
      %366 = vmatpush1.msra.mxu0 %v315
      %367 = vmatprep.subr.mxu0 0.0
      %368 = vmatpush1.msra.mxu0 %v314
      %369 = vmatprep.subr.mxu0 0.0
      %370 = vmatpush2.msra.mxu0 0.0
      %371 = vmatprep.subr.mxu0 0.0
      %372 = vmatpush2.msra.mxu0 0.0
      %373 = vmatprep.subr.mxu0 0.0
      %374 = vmatpush2.msra.mxu0 0.0
      %375 = vmatprep.subr.mxu0 0.0
      %376 = vmatpush2.msra.mxu0 0.0
      %377 = vmatprep.subr.mxu0 0.0
      %378 = vmatpush2.msra.mxu0 0.0
      %379 = vmatprep.subr.mxu0 0.0
      %380 = vmatpush2.msra.mxu0 0.0
      %381 = vmatprep.subr.mxu0 0.0
      %382 = vmatpush2.msra.mxu0 0.0
      %383 = vmatprep.subr.mxu0 0.0
      %384 = vmatpush2.msra.mxu0 0.0
      %385 = vmatprep.subr.mxu0 0.0
      %386 = vmatpush2.msra.mxu0 0.0
      %387 = vmatprep.subr.mxu0 0.0
      %388 = vmatpush2.msra.mxu0 0.0
      %389 = vmatprep.subr.mxu0 0.0
      %390 = vmatpush2.msra.mxu0 0.0
      %391 = vmatprep.subr.mxu0 0.0
      %392 = vmatpush2.msra.mxu0 0.0
      %393 = vmatprep.subr.mxu0 0.0
      %394 = vmatpush2.msra.mxu0 0.0
      %395 = vmatprep.subr.mxu0 0.0
      %396 = vmatpush2.msra.mxu0 0.0
      %397 = vmatprep.subr.mxu0 0.0
      %398 = vmatpush2.msra.mxu0 0.0
      %399 = vmatprep.subr.mxu0 0.0
      %400 = vmatpush2.msra.mxu0 0.0
      %401 = vmatprep.mubr.f32.mxu0 0.0
      %402 = vmatmul.mubr.f32.gmra.mxu0 %v313
      %v403 = vpop.f32.mrf.mxu0
      %v404 = vadd.f32 %v335, %v403
      %v405 = vpop.f32.mrf.mxu0
      %406 = vdwg.mxu0
      %v407 = vmax.f32 %v404, 0.0
      %v408 = vld [vmem:[%s3] sm:$0xff]
      %v409 = vld [vmem:[%s3 + $0x8] sm:$0xff]
      %v410 = vld [vmem:[%s3 + $0x10] sm:$0xff]
      %v411 = vld [vmem:[%s3 + $0x18] sm:$0xff]
      %v412 = vld [vmem:[%s3 + $0x20] sm:$0xff]
      %v413 = vld [vmem:[%s3 + $0x28] sm:$0xff]
      %v414 = vld [vmem:[%s3 + $0x30] sm:$0xff]
      %v415 = vld [vmem:[%s3 + $0x38] sm:$0xff]
      %v416 = vld [vmem:[%s3 + $0x40] sm:$0xff]
      %v417 = vld [vmem:[%s3 + $0x48] sm:$0xff]
      %v418 = vld [vmem:[%s3 + $0x50] sm:$0xff]
      %v419 = vld [vmem:[%s3 + $0x58] sm:$0xff]
      %v420 = vld [vmem:[%s3 + $0x60] sm:$0xff]
      %v421 = vld [vmem:[%s3 + $0x68] sm:$0xff]
      %v422 = vld [vmem:[%s3 + $0x70] sm:$0xff]
      %v423 = vld [vmem:[%s3 + $0x78] sm:$0xff]
      %v424 = vld [vmem:[%s4] sm:$0x1]
      %v426 = vlaneseq
      %v427 = vshrl.u32 %v426, 7
      %v428 = vsub.s32 0, %v427
      %v429 = vrot.slane %v424, %v428
      %431 = vmatprep.subr.mxu0 0.0
      %432 = vmatpush1.msra.mxu0 %v423
      %433 = vmatprep.subr.mxu0 0.0
      %434 = vmatpush1.msra.mxu0 %v422
      %435 = vmatprep.subr.mxu0 0.0
      %436 = vmatpush1.msra.mxu0 %v421
      %437 = vmatprep.subr.mxu0 0.0
      %438 = vmatpush1.msra.mxu0 %v420
      %439 = vmatprep.subr.mxu0 0.0
      %440 = vmatpush1.msra.mxu0 %v419
      %441 = vmatprep.subr.mxu0 0.0
      %442 = vmatpush1.msra.mxu0 %v418
      %443 = vmatprep.subr.mxu0 0.0
      %444 = vmatpush1.msra.mxu0 %v417
      %445 = vmatprep.subr.mxu0 0.0
      %446 = vmatpush1.msra.mxu0 %v416
      %447 = vmatprep.subr.mxu0 0.0
      %448 = vmatpush1.msra.mxu0 %v415
      %449 = vmatprep.subr.mxu0 0.0
      %450 = vmatpush1.msra.mxu0 %v414
      %451 = vmatprep.subr.mxu0 0.0
      %452 = vmatpush1.msra.mxu0 %v413
      %453 = vmatprep.subr.mxu0 0.0
      %454 = vmatpush1.msra.mxu0 %v412
      %455 = vmatprep.subr.mxu0 0.0
      %456 = vmatpush1.msra.mxu0 %v411
      %457 = vmatprep.subr.mxu0 0.0
      %458 = vmatpush1.msra.mxu0 %v410
      %459 = vmatprep.subr.mxu0 0.0
      %460 = vmatpush1.msra.mxu0 %v409
      %461 = vmatprep.subr.mxu0 0.0
      %462 = vmatpush1.msra.mxu0 %v408
      %463 = vmatprep.subr.mxu0 0.0
      %464 = vmatpush2.msra.mxu0 0.0
      %465 = vmatprep.subr.mxu0 0.0
      %466 = vmatpush2.msra.mxu0 0.0
      %467 = vmatprep.subr.mxu0 0.0
      %468 = vmatpush2.msra.mxu0 0.0
      %469 = vmatprep.subr.mxu0 0.0
      %470 = vmatpush2.msra.mxu0 0.0
      %471 = vmatprep.subr.mxu0 0.0
      %472 = vmatpush2.msra.mxu0 0.0
      %473 = vmatprep.subr.mxu0 0.0
      %474 = vmatpush2.msra.mxu0 0.0
      %475 = vmatprep.subr.mxu0 0.0
      %476 = vmatpush2.msra.mxu0 0.0
      %477 = vmatprep.subr.mxu0 0.0
      %478 = vmatpush2.msra.mxu0 0.0
      %479 = vmatprep.subr.mxu0 0.0
      %480 = vmatpush2.msra.mxu0 0.0
      %481 = vmatprep.subr.mxu0 0.0
      %482 = vmatpush2.msra.mxu0 0.0
      %483 = vmatprep.subr.mxu0 0.0
      %484 = vmatpush2.msra.mxu0 0.0
      %485 = vmatprep.subr.mxu0 0.0
      %486 = vmatpush2.msra.mxu0 0.0
      %487 = vmatprep.subr.mxu0 0.0
      %488 = vmatpush2.msra.mxu0 0.0
      %489 = vmatprep.subr.mxu0 0.0
      %490 = vmatpush2.msra.mxu0 0.0
      %491 = vmatprep.subr.mxu0 0.0
      %492 = vmatpush2.msra.mxu0 0.0
      %493 = vmatprep.subr.mxu0 0.0
      %494 = vmatpush2.msra.mxu0 0.0
      %495 = vmatprep.mubr.f32.mxu0 0.0
      %496 = vmatmul.mubr.f32.gmra.mxu0 %v407
      %v497 = vpop.f32.mrf.mxu0
      %v498 = vadd.f32 %v429, %v497
      %v499 = vpop.f32.mrf.mxu0
      %500 = vdwg.mxu0
      %v501 = vadd.f32 %v498, %v313
      %502 = vadd.xlane.f32.xlu0 %v501
      %v503 = vpop.xlane.xlu0 %502
      %v504 = vmul.f32 %v503, 0.03125
      %v505 = vsub.f32 %v501, %v504
      %v506 = vld [vmem:[%s7] sm:$0x1]
      %v508 = vlaneseq
      %v509 = vshrl.u32 %v508, 7
      %v510 = vsub.s32 0, %v509
      %v511 = vrot.slane %v506, %v510
      %v513 = vmul.f32 %v505, %v511
      %v514 = vmul.f32 %v513, %v513
      %515 = vadd.xlane.f32.xlu0 %v514
      %v516 = vpop.xlane.xlu0 %515
      %v517 = vmul.f32 %v516, 0.03125
      %v518 = vadd.f32 %v517, 1e-05
      %v519 = vrsqrt.pop %v518
      %v520 = vmul.f32 %v505, %v519
      %v521 = vld [vmem:[%s5] sm:$0x1]
      %v523 = vlaneseq
      %v524 = vshrl.u32 %v523, 7
      %v525 = vsub.s32 0, %v524
      %v526 = vrot.slane %v521, %v525
      %v528 = vmul.f32 %v520, %v526
      %v529 = vld [vmem:[%s6] sm:$0x1]
      %v531 = vlaneseq
      %v532 = vshrl.u32 %v531, 7
      %v533 = vsub.s32 0, %v532
      %v534 = vrot.slane %v529, %v533
      %v536 = vadd.f32 %v528, %v534
      %537 = vst [vmem:[%s312] sm:$0xff] %v536
      %p538 = scmp.lt.s32.totalorder %s23, 1
      %s539 = scalar_select %p538, %s23, 1
      %s540 = smul.addr %s539, 8
      %s541 = scalar_lea.vmem %s8, %s540
      // Predicated region
      $region53: #{positionwise_ffn.1} parent=51 // pred_check
        %p542 = pneg %p222
      $region54: #{positionwise_ffn.1} parent=51 // pred_check_branch
        %544 = sbr.rel (%p542) target = $region56
      $region55: #{positionwise_ffn.1} parent=51 // pred_region
        _
      $region56: #{positionwise_ffn.1} parent=51 // pred_fallthru
        _
    $region52: #{positionwise_ffn.1} parent=5 // pred_fallthru
      _
    %p545 = scmp.le.s32.totalorder 2, %s14
    // Predicated region
    $region57: #{positionwise_ffn.1} parent=5 // pred_check
      %p546 = pneg %p545
    $region58: #{positionwise_ffn.1} parent=5 // pred_check_branch
      %548 = sbr.rel (%p546) target = $region60
    $region59: #{positionwise_ffn.1} parent=5 // pred_region
      %s549 = ssub.s32 %s14, 2
      // Predicated region
      $region61: #{positionwise_ffn.1} parent=59 // pred_check
        %p550 = pneg %p228
      $region62: #{positionwise_ffn.1} parent=59 // pred_check_branch
        %552 = sbr.rel (%p550) target = $region64
      $region63: #{positionwise_ffn.1} parent=59 // pred_region
        %p553 = scmp.lt.s32.totalorder %s25, 1
        %s554 = scalar_select %p553, %s25, 1
        %s555 = smul.addr %s554, 8
        %s556 = scalar_lea.vmem %s8, %s555
      $region64: #{positionwise_ffn.1} parent=59 // pred_fallthru
        _
    $region60: #{positionwise_ffn.1} parent=5 // pred_fallthru
      _
  $region6: #{positionwise_ffn.1} parent=0 // loop_footer
    %s18 = sadd.s32 1, %s14
  $region7: #{positionwise_ffn.1} parent=0 // loop_footer_branch
    %13 = sbr.rel target = $region3
  $region8: #{positionwise_ffn.1} parent=0 // loop_exit
    _

</llo_original>
